<compile_context>
chip_gen: v6e
topology: v6e:2x2x1
jax: 0.10.0
libtpu: 0.0.40
codegen_flags: <defaults>
</compile_context>

<pallas_src>
import jax
import jax.numpy as jnp
import numpy as np
from jax.experimental import pallas as pl
from jax.experimental.pallas import tpu as pltpu

EPS = 1e-5
ROW_TILE_MAX = 512          # sublane-dim tile cap for the two-pass path


def _round_up(v, m):
    return ((v + m - 1) // m) * m


def _vmem_budget():
    """Per-core VMEM budget: physical capacity minus headroom (fallback 64 MiB)."""
    cap = 64 * 1024 * 1024
    try:
        cap = int(pltpu.get_tpu_info().vmem_capacity_bytes)
    except Exception:
        pass
    return max(16 * 1024 * 1024, cap - 16 * 1024 * 1024)


def _sublane_align(itemsize):
    return {4: 8, 2: 16, 1: 32}.get(itemsize, 8)


def _pick_block(size, align, cap):
    """Block size along one axis: multiple of `align`, <= cap, or the full extent."""
    cap = max(align, (cap // align) * align)
    if size <= cap:
        return size, 1                       # full extent is always a legal block
    n = -(-size // cap)
    block = _round_up(-(-size // n), align)
    return block, -(-size // block)


def _pick_channel_block(C, N, HW, elem_cost, limit, align):
    """Largest channel block (divisor of C, sublane aligned or == C) whose fused
    VMEM footprint fits `limit`; prefer >= 2 grid steps (pipelining / megacore)."""
    per_c = N * HW * elem_cost
    cands = [d for d in range(align, C, align) if C % d == 0] + [C]
    fitting = [d for d in cands if d * per_c <= limit]
    if not fitting:
        return None
    multi = [d for d in fitting if C // d >= 2]
    return max(multi) if multi else max(fitting)


# --------------------------- Path A: fused kernel ----------------------------

def _fused_kernel(x_ref, g_ref, b_ref, o_ref):
    # x_ref: (N, cb, HW); g_ref/b_ref: (N, cb, 1) f32; whole stat group resident.
    xf = x_ref[...].astype(jnp.float32)
    n, cb, hw = xf.shape
    inv_count = 1.0 / float(n * hw)
    mean = jnp.sum(jnp.sum(xf, axis=0, keepdims=True),
                   axis=2, keepdims=True) * inv_count                  # (1, cb, 1)
    centered = xf - mean
    var = jnp.sum(jnp.sum(centered * centered, axis=0, keepdims=True),
                  axis=2, keepdims=True) * inv_count                   # (1, cb, 1)
    inv_std = jax.lax.rsqrt(var + EPS)
    scale = g_ref[...] * inv_std                                       # (N, cb, 1)
    o_ref[...] = (centered * scale + b_ref[...]).astype(o_ref.dtype)


def _fused_call(x, gamma, beta, c_block, budget, donate_x):
    N, C, H, W = x.shape
    HW = H * W
    itemsize = jnp.dtype(x.dtype).itemsize
    x3 = x.reshape(N, C, HW)
    g3 = gamma.reshape(N, C, 1)
    b3 = beta.reshape(N, C, 1)
    n_c = C // c_block

    kwargs = {"input_output_aliases": {0: 0}} if donate_x else {}
    out3 = pl.pallas_call(
        _fused_kernel,
        out_shape=jax.ShapeDtypeStruct((N, C, HW), x.dtype),
        grid=(n_c,),
        in_specs=[
            pl.BlockSpec((N, c_block, HW), lambda c: (0, c, 0)),
            pl.BlockSpec((N, c_block, 1), lambda c: (0, c, 0)),
            pl.BlockSpec((N, c_block, 1), lambda c: (0, c, 0)),
        ],
        out_specs=pl.BlockSpec((N, c_block, HW), lambda c: (0, c, 0)),
        compiler_params=pltpu.CompilerParams(
            dimension_semantics=("parallel",),
            vmem_limit_bytes=budget),
        cost_estimate=pl.CostEstimate(
            flops=7 * N * C * HW, transcendentals=C,
            bytes_accessed=2 * N * C * HW * itemsize),
        **kwargs,
    )(x3, g3, b3)
    return out3.reshape(N, C, H, W)


# ------------------ Path B pass 1: per-(n,c)-row sum / sumsq ------------------

def _make_stats_kernel(hw_total, hw_block, n_hw, row_block):
    if n_hw == 1:
        # Single HW tile == full extent: no OOB lanes, reduce + store directly.
        def kernel(x_ref, sum_ref, sumsq_ref):
            x = x_ref[...].astype(jnp.float32)
            sum_ref[...] = jnp.sum(x, axis=1, keepdims=True)
            sumsq_ref[...] = jnp.sum(x * x, axis=1, keepdims=True)
        return kernel, []

    ragged = (hw_total % hw_block) != 0
    groups = hw_block // 128          # hw_block is a multiple of 128 when n_hw > 1

    def kernel(x_ref, sum_ref, sumsq_ref, acc_s, acc_q):
        t = pl.program_id(1)

        @pl.when(t == 0)
        def _init():
            acc_s[...] = jnp.zeros_like(acc_s)
            acc_q[...] = jnp.zeros_like(acc_q)

        x = x_ref[...].astype(jnp.float32)
        if ragged:
            # Mask out-of-range lanes of the (possibly partial) last HW tile:
            # OOB reads are unspecified and must not contaminate the row sums.
            col = t * hw_block + jax.lax.broadcasted_iota(jnp.int32, x.shape, 1)
            x = jnp.where(col < hw_total, x, 0.0)

        # Lane-group folding with VPU adds into a lane-dense accumulator; the
        # cross-lane (XLU) reduce happens once per row tile, not once per HW tile.
        fs = x[:, 0:128]
        fq = fs * fs
        for g in range(1, groups):
            xs = x[:, g * 128:(g + 1) * 128]
            fs = fs + xs
            fq = fq + xs * xs
        acc_s[...] += fs
        acc_q[...] += fq

        @pl.when(t == n_hw - 1)
        def _finalize():
            sum_ref[...] = jnp.sum(acc_s[...], axis=1, keepdims=True)
            sumsq_ref[...] = jnp.sum(acc_q[...], axis=1, keepdims=True)

    scratch = [pltpu.VMEM((row_block, 128), jnp.float32),
               pltpu.VMEM((row_block, 128), jnp.float32)]
    return kernel, scratch


# ------------- Path B pass 2: streamed  out = x * scale + shift --------------

def _norm_kernel(x_ref, scale_ref, shift_ref, o_ref):
    x = x_ref[...].astype(jnp.float32)
    o_ref[...] = (x * scale_ref[...] + shift_ref[...]).astype(o_ref.dtype)


# --------------------------------- Wrapper -----------------------------------

def conditional_batch_norm_2d(x, z, wg, bg, wb, bb, *, donate_x=False,
                              fused_block_limit=None, hw_tile_cap=None):
    """x: (N, C, H, W); z: (N, L); wg, wb: (L, C) transposed Linear weights;
    bg, bb: (1, C) biases. Returns (N, C, H, W) matching the module's forward."""
    N, C, H, W = x.shape
    HWtot = H * W
    rows = N * C
    itemsize = jnp.dtype(x.dtype).itemsize
    sub_align = _sublane_align(itemsize)
    budget = _vmem_budget()

    # Tiny conditional affine: far too small for an MXU loop -> plain XLA glue.
    zf = z.astype(jnp.float32)
    gamma = jnp.dot(zf, wg.astype(jnp.float32),
                    preferred_element_type=jnp.float32) + bg.astype(jnp.float32)
    beta = jnp.dot(zf, wb.astype(jnp.float32),
                   preferred_element_type=jnp.float32) + bb.astype(jnp.float32)

    # ---- Path A: fused single pass when an (N, c_block, HW) block fits VMEM.
    elem_cost = 4 * itemsize + 12          # dbl-buffered in+out (native) + f32 temps
    limit = fused_block_limit if fused_block_limit is not None else (budget * 3) // 5
    c_block = _pick_channel_block(C, N, HWtot, elem_cost, limit, sub_align)
    if c_block is not None:
        return _fused_call(x, gamma, beta, c_block, budget, donate_x)

    # ---- Path B: two streamed passes (stats, then normalize). No host padding.
    row_block, n_row = _pick_block(rows, sub_align, ROW_TILE_MAX)
    if n_row == 1 and rows >= 2 * sub_align:
        # >= 2 parallel row steps so v7x megacore can split the stats pass.
        row_block = _round_up(-(-rows // 2), sub_align)
        n_row = -(-rows // row_block)

    tile_cap = min(8 * 1024 * 1024, budget // 6)
    if hw_tile_cap is None:
        hw_tile_cap = max(128, (tile_cap // (row_block * itemsize)) // 128 * 128)
    hw_block, n_hw = _pick_block(HWtot, 128, hw_tile_cap)

    x2 = x.reshape(rows, HWtot)

    stats_kernel, scratch = _make_stats_kernel(HWtot, hw_block, n_hw, row_block)
    row_sum, row_sumsq = pl.pallas_call(
        stats_kernel,
        out_shape=(jax.ShapeDtypeStruct((rows, 1), jnp.float32),
                   jax.ShapeDtypeStruct((rows, 1), jnp.float32)),
        grid=(n_row, n_hw),
        in_specs=[pl.BlockSpec((row_block, hw_block), lambda r, t: (r, t))],
        out_specs=(pl.BlockSpec((row_block, 1), lambda r, t: (r, 0)),
                   pl.BlockSpec((row_block, 1), lambda r, t: (r, 0))),
        scratch_shapes=scratch,
        compiler_params=pltpu.CompilerParams(
            dimension_semantics=("parallel", "arbitrary"),
            vmem_limit_bytes=budget),
        cost_estimate=pl.CostEstimate(
            flops=3 * rows * HWtot, transcendentals=0,
            bytes_accessed=rows * HWtot * itemsize + 2 * rows * 4),
    )(x2)

    # Tiny finalize (off the hot path).  NOTE: E[x^2]-mean^2 can cancel for
    # activations far from zero; the fused path A uses the centered form instead.
    count = jnp.float32(N * HWtot)
    mean = jnp.sum(row_sum[:, 0].reshape(N, C), axis=0) / count              # (C,)
    var = jnp.maximum(jnp.sum(row_sumsq[:, 0].reshape(N, C), axis=0) / count
                      - mean * mean, 0.0)                                    # biased
    inv_std = jax.lax.rsqrt(var + EPS)
    scale = gamma * inv_std[None, :]                                         # (N, C)
    shift = beta - gamma * (mean * inv_std)[None, :]                         # (N, C)
    scale_rows = scale.reshape(rows, 1)
    shift_rows = shift.reshape(rows, 1)

    kwargs = {"input_output_aliases": {0: 0}} if donate_x else {}
    out2 = pl.pallas_call(
        _norm_kernel,
        out_shape=jax.ShapeDtypeStruct((rows, HWtot), x.dtype),
        grid=(n_row, n_hw),
        in_specs=[pl.BlockSpec((row_block, hw_block), lambda r, t: (r, t)),
                  pl.BlockSpec((row_block, 1), lambda r, t: (r, 0)),
                  pl.BlockSpec((row_block, 1), lambda r, t: (r, 0))],
        out_specs=pl.BlockSpec((row_block, hw_block), lambda r, t: (r, t)),
        compiler_params=pltpu.CompilerParams(
            dimension_semantics=("parallel", "parallel"),
            vmem_limit_bytes=budget),
        cost_estimate=pl.CostEstimate(
            flops=2 * rows * HWtot, transcendentals=0,
            bytes_accessed=2 * rows * HWtot * itemsize),
        **kwargs,
    )(x2, scale_rows, shift_rows)
    return out2.reshape(N, C, H, W)


def _reference(x, z, wg, bg, wb, bb):
    gamma = z @ wg + bg
    beta = z @ wb + bb
    mean = jnp.mean(x, axis=(0, 2, 3), keepdims=True)
    var = jnp.var(x, axis=(0, 2, 3), keepdims=True)      # biased, like F.batch_norm
    xhat = (x - mean) / jnp.sqrt(var + EPS)
    return gamma[:, :, None, None] * xhat + beta[:, :, None, None]


if __name__ == "__main__":
    # --- Primary test: module-consistent small shape (fused path A). ---
    N, C, H, W = 2, 4, 16, 16
    latent_dim = 8

    key = jax.random.PRNGKey(0)
    kx, kz = jax.random.split(key)
    x = jax.random.normal(kx, (N, C, H, W), dtype=jnp.float32)
    z = jax.random.normal(kz, (N, latent_dim), dtype=jnp.float32)

    # Parameters matching the module __init__ (weights pre-transposed to (L, C)):
    #   gamma_fc.weight = ones, beta_fc.weight = zeros, both biases = zeros.
    wg = jnp.ones((latent_dim, C), dtype=jnp.float32)
    bg = jnp.zeros((1, C), dtype=jnp.float32)
    wb = jnp.zeros((latent_dim, C), dtype=jnp.float32)
    bb = jnp.zeros((1, C), dtype=jnp.float32)

    fn = jax.jit(conditional_batch_norm_2d)
    out = jax.block_until_ready(fn(x, z, wg, bg, wb, bb))
    ref = _reference(x, z, wg, bg, wb, bb)
    np.testing.assert_allclose(np.asarray(out), np.asarray(ref), rtol=1e-4, atol=1e-4)

    # --- Secondary test: force the two-pass streaming path (path B) with ragged
    #     HW tiles to exercise the in-kernel edge masking and accumulation. ---
    N2, C2, H2, W2 = 2, 6, 12, 20
    x2 = jax.random.normal(jax.random.PRNGKey(1), (N2, C2, H2, W2), dtype=jnp.float32)
    z2 = jax.random.normal(jax.random.PRNGKey(2), (N2, latent_dim), dtype=jnp.float32)
    wg2 = 1.0 + 0.1 * jax.random.normal(jax.random.PRNGKey(3), (latent_dim, C2), dtype=jnp.float32)
    bg2 = 0.1 * jax.random.normal(jax.random.PRNGKey(4), (1, C2), dtype=jnp.float32)
    wb2 = 0.1 * jax.random.normal(jax.random.PRNGKey(5), (latent_dim, C2), dtype=jnp.float32)
    bb2 = 0.1 * jax.random.normal(jax.random.PRNGKey(6), (1, C2), dtype=jnp.float32)

    fn2 = jax.jit(lambda *a: conditional_batch_norm_2d(
        *a, fused_block_limit=0, hw_tile_cap=128))
    out2 = jax.block_until_ready(fn2(x2, z2, wg2, bg2, wb2, bb2))
    ref2 = _reference(x2, z2, wg2, bg2, wb2, bb2)
    np.testing.assert_allclose(np.asarray(out2), np.asarray(ref2), rtol=1e-4, atol=1e-4)

    print("KERNEL_OK")
</pallas_src>

<mosaic_0001>
module attributes {stable_mosaic.version = 11 : i64} {
  func.func @_fused_kernel(%arg0: i32, %arg1: memref<2x4x256xf32, #tpu.memory_space<vmem>>, %arg2: memref<2x4x1xf32, #tpu.memory_space<vmem>>, %arg3: memref<2x4x1xf32, #tpu.memory_space<vmem>>, %arg4: memref<2x4x256xf32, #tpu.memory_space<vmem>>) attributes {dimension_semantics = [#tpu.dimension_semantics<parallel>], iteration_bounds = array<i64: 1>, scalar_prefetch = 0 : i64, scratch_operands = 0 : i64, tpu.core_type = #tpu.core_type<tc>, window_params = [{transform_indices = @transform_0, window_bounds = array<i64: 2, 4, 256>}, {transform_indices = @transform_1, window_bounds = array<i64: 2, 4, 1>}, {transform_indices = @transform_2, window_bounds = array<i64: 2, 4, 1>}, {transform_indices = @transform_3, window_bounds = array<i64: 2, 4, 256>}]} {
    %c0 = arith.constant 0 : index
    %c0_0 = arith.constant 0 : index
    %c0_1 = arith.constant 0 : index
    %0 = vector.load %arg1[%c0, %c0_0, %c0_1] : memref<2x4x256xf32, #tpu.memory_space<vmem>>, vector<2x4x256xf32>
    %cst = arith.constant dense<0.000000e+00> : vector<4x256xf32>
    %1 = vector.multi_reduction <add>, %0, %cst [0] : vector<2x4x256xf32> to vector<4x256xf32>
    %2 = vector.shape_cast %1 : vector<4x256xf32> to vector<1x4x256xf32>
    %cst_2 = arith.constant dense<0.000000e+00> : vector<1x4xf32>
    %3 = vector.multi_reduction <add>, %2, %cst_2 [2] : vector<1x4x256xf32> to vector<1x4xf32>
    %4 = vector.shape_cast %3 : vector<1x4xf32> to vector<1x4x1xf32>
    %cst_3 = arith.constant 0.001953125 : f32
    %5 = vector.broadcast %cst_3 : f32 to vector<1x4x1xf32>
    %6 = arith.mulf %4, %5 : vector<1x4x1xf32>
    %7 = vector.broadcast %6 : vector<1x4x1xf32> to vector<2x4x256xf32>
    %8 = arith.subf %0, %7 : vector<2x4x256xf32>
    %9 = arith.mulf %8, %8 : vector<2x4x256xf32>
    %cst_4 = arith.constant dense<0.000000e+00> : vector<4x256xf32>
    %10 = vector.multi_reduction <add>, %9, %cst_4 [0] : vector<2x4x256xf32> to vector<4x256xf32>
    %11 = vector.shape_cast %10 : vector<4x256xf32> to vector<1x4x256xf32>
    %cst_5 = arith.constant dense<0.000000e+00> : vector<1x4xf32>
    %12 = vector.multi_reduction <add>, %11, %cst_5 [2] : vector<1x4x256xf32> to vector<1x4xf32>
    %13 = vector.shape_cast %12 : vector<1x4xf32> to vector<1x4x1xf32>
    %cst_6 = arith.constant 0.001953125 : f32
    %14 = vector.broadcast %cst_6 : f32 to vector<1x4x1xf32>
    %15 = arith.mulf %13, %14 : vector<1x4x1xf32>
    %cst_7 = arith.constant 9.99999974E-6 : f32
    %16 = vector.broadcast %cst_7 : f32 to vector<1x4x1xf32>
    %17 = arith.addf %15, %16 : vector<1x4x1xf32>
    %18 = math.rsqrt %17 : vector<1x4x1xf32>
    %c0_8 = arith.constant 0 : index
    %c0_9 = arith.constant 0 : index
    %c0_10 = arith.constant 0 : index
    %19 = vector.load %arg2[%c0_8, %c0_9, %c0_10] : memref<2x4x1xf32, #tpu.memory_space<vmem>>, vector<2x4x1xf32>
    %20 = vector.broadcast %18 : vector<1x4x1xf32> to vector<2x4x1xf32>
    %21 = arith.mulf %19, %20 : vector<2x4x1xf32>
    %22 = vector.broadcast %21 : vector<2x4x1xf32> to vector<2x4x256xf32>
    %23 = arith.mulf %8, %22 : vector<2x4x256xf32>
    %c0_11 = arith.constant 0 : index
    %c0_12 = arith.constant 0 : index
    %c0_13 = arith.constant 0 : index
    %24 = vector.load %arg3[%c0_11, %c0_12, %c0_13] : memref<2x4x1xf32, #tpu.memory_space<vmem>>, vector<2x4x1xf32>
    %25 = vector.broadcast %24 : vector<2x4x1xf32> to vector<2x4x256xf32>
    %26 = arith.addf %23, %25 : vector<2x4x256xf32>
    %c0_14 = arith.constant 0 : index
    %c0_15 = arith.constant 0 : index
    %c0_16 = arith.constant 0 : index
    %27 = vector.load %arg4[%c0_14, %c0_15, %c0_16] : memref<2x4x256xf32, #tpu.memory_space<vmem>>, vector<2x4x256xf32>
    tpu.vector_store %arg4[%c0_14, %c0_15, %c0_16], %26 {strides = array<i32>} : memref<2x4x256xf32, #tpu.memory_space<vmem>>, vector<2x4x256xf32>,
    return
  }
  func.func @transform_0(%arg0: i32) -> (i32, i32, i32) {
    %c0_i32 = arith.constant 0 : i32
    %c0_i32_0 = arith.constant 0 : i32
    %c0_i32_1 = arith.constant 0 : i32
    return %c0_i32, %arg0, %c0_i32_0 : i32, i32, i32
  }
  func.func @transform_1(%arg0: i32) -> (i32, i32, i32) {
    %c0_i32 = arith.constant 0 : i32
    %c0_i32_0 = arith.constant 0 : i32
    %c0_i32_1 = arith.constant 0 : i32
    return %c0_i32, %arg0, %c0_i32_0 : i32, i32, i32
  }
  func.func @transform_2(%arg0: i32) -> (i32, i32, i32) {
    %c0_i32 = arith.constant 0 : i32
    %c0_i32_0 = arith.constant 0 : i32
    %c0_i32_1 = arith.constant 0 : i32
    return %c0_i32, %arg0, %c0_i32_0 : i32, i32, i32
  }
  func.func @transform_3(%arg0: i32) -> (i32, i32, i32) {
    %c0_i32 = arith.constant 0 : i32
    %c0_i32_0 = arith.constant 0 : i32
    %c0_i32_1 = arith.constant 0 : i32
    return %c0_i32, %arg0, %c0_i32_0 : i32, i32, i32
  }
}

</mosaic_0001>

<llo_original>
// kernel: conditional_batch_norm_2d.1
$region0: #{conditional_batch_norm_2d.1}
  #allocation0 [shape = 'u32[]', space=smem, size = 0x4, offset = 0x4, fixed_abs, tag = 'smem constant byte address 0x4 - core index']
  #allocation1 [shape = 'u32[144,128]{1,0:T(1,128)}', space=vmem, size = 0x12000, scoped, tag = 'internal scratch']
  %s0 = inlined_call_operand.vmem [shape: f32[2,4,256], index: 0, kind: input, shape index: {}]
  %s1 = inlined_call_operand.vmem [shape: f32[2,4,1], index: 1, kind: input, shape index: {}]
  %s2 = inlined_call_operand.vmem [shape: f32[2,4,1], index: 2, kind: input, shape index: {}]
  %s3 = inlined_call_operand.vmem [shape: f32[2,4,256], index: 3, kind: output, shape index: {}]
  %s4 = sld [smem:[#allocation0]]
  $region22: #{conditional_batch_norm_2d.1} parent=0
    _
  %s6 = ssub.s32 1, %s4
  %s7 = scalar_select 0, %s6, %s4
  // Predicated region
  $region2: #{conditional_batch_norm_2d.1} parent=0 // pred_check
    _
  $region3: #{conditional_batch_norm_2d.1} parent=0 // pred_check_branch
    %9 = sbr.rel (0) target = $region5
  $region4: #{conditional_batch_norm_2d.1} parent=0 // pred_region
    _
  $region5: #{conditional_batch_norm_2d.1} parent=0 // pred_fallthru
    _
  // Predicated region
  $region6: #{conditional_batch_norm_2d.1} parent=0 // pred_check
    _
  $region7: #{conditional_batch_norm_2d.1} parent=0 // pred_check_branch
    %11 = sbr.rel (0) target = $region9
  $region8: #{conditional_batch_norm_2d.1} parent=0 // pred_region
    _
  $region9: #{conditional_batch_norm_2d.1} parent=0 // pred_fallthru
    _
  // Predicated region
  $region10: #{conditional_batch_norm_2d.1} parent=0 // pred_check
    _
  $region11: #{conditional_batch_norm_2d.1} parent=0 // pred_check_branch
    %13 = sbr.rel (0) target = $region13
  $region12: #{conditional_batch_norm_2d.1} parent=0 // pred_region
    _
  $region13: #{conditional_batch_norm_2d.1} parent=0 // pred_fallthru
    _
  %v14 = vld [vmem:[%s0] sm:$0xff]
  %v15 = vld [vmem:[%s0 + $0x8] sm:$0xff]
  %v18 = vcombine.high %v14, %v14
  %v19 = vcombine.high %v15, %v15
  %vm22 = vcmask 1043456
  %v23 = vsel %vm22, %v14, 0.0
  %v24 = vsel %vm22, %v15, 0.0
  %v25 = vadd.f32 %v23, %v24
  %v26 = vsel %vm22, %v18, 0.0
  %v27 = vsel %vm22, %v19, 0.0
  %v28 = vadd.f32 %v26, %v27
  %v29 = vsel %vm22, %v25, 0.0
  %v30 = vsel %vm22, %v28, 0.0
  %v31 = vadd.f32 %v29, %v30
  %32 = vadd.xlane.f32.xlu0 %v31
  %v33 = vpop.xlane.xlu0 %32
  %v34 = vmul.f32 %v33, 0.001953125
  %v37 = vunpack.c.l.s4 839922192
  %v38 = vunpack.c.0.s8 %v37
  %v39 = vlaneseq
  %v40 = vshrl.u32 %v39, 7
  %v41 = vsub.s32 %v38, %v40
  %v42 = vrot.slane %v34, %v41
  %v44 = vsub.f32 %v14, %v42
  %v45 = vsub.f32 %v15, %v42
  %v46 = vmul.f32 %v44, %v44
  %v47 = vmul.f32 %v45, %v45
  %v50 = vcombine.high %v46, %v46
  %v51 = vcombine.high %v47, %v47
  %v54 = vsel %vm22, %v46, 0.0
  %v55 = vsel %vm22, %v47, 0.0
  %v56 = vadd.f32 %v54, %v55
  %v57 = vsel %vm22, %v50, 0.0
  %v58 = vsel %vm22, %v51, 0.0
  %v59 = vadd.f32 %v57, %v58
  %v60 = vsel %vm22, %v56, 0.0
  %v61 = vsel %vm22, %v59, 0.0
  %v62 = vadd.f32 %v60, %v61
  %63 = vadd.xlane.f32.xlu0 %v62
  %v64 = vpop.xlane.xlu0 %63
  %v65 = vmul.f32 %v64, 0.001953125
  %v66 = vadd.f32 %v65, 1e-05
  %v67 = vrsqrt.pop %v66
  %v68 = vld [vmem:[%s1] sm:$0xf]
  %v69 = vld [vmem:[%s1 + $0x4] sm:$0xf]
  %v70 = vmul.f32 %v68, %v67
  %v71 = vmul.f32 %v69, %v67
  %73 = vset.pattern.permute.xlu0 0
  %74 = vperm.xlu0 %73, %v70
  %v75 = vpop.permute.xlu0 %74
  %77 = vset.pattern.permute.xlu0 0
  %78 = vperm.xlu0 %77, %v71
  %v79 = vpop.permute.xlu0 %78
  %v81 = vunpack.c.l.s4 839922192
  %v82 = vunpack.c.0.s8 %v81
  %v83 = vlaneseq
  %v84 = vshrl.u32 %v83, 7
  %v85 = vsub.s32 %v82, %v84
  %v86 = vrot.slane %v75, %v85
  %v88 = vunpack.c.l.s4 839922192
  %v89 = vunpack.c.0.s8 %v88
  %v90 = vlaneseq
  %v91 = vshrl.u32 %v90, 7
  %v92 = vsub.s32 %v89, %v91
  %v93 = vrot.slane %v79, %v92
  %v96 = vmul.f32 %v44, %v86
  %v97 = vmul.f32 %v45, %v93
  %v98 = vld [vmem:[%s2] sm:$0xf]
  %v99 = vld [vmem:[%s2 + $0x4] sm:$0xf]
  %101 = vset.pattern.permute.xlu0 0
  %102 = vperm.xlu0 %101, %v98
  %v103 = vpop.permute.xlu0 %102
  %105 = vset.pattern.permute.xlu0 0
  %106 = vperm.xlu0 %105, %v99
  %v107 = vpop.permute.xlu0 %106
  %v109 = vunpack.c.l.s4 839922192
  %v110 = vunpack.c.0.s8 %v109
  %v111 = vlaneseq
  %v112 = vshrl.u32 %v111, 7
  %v113 = vsub.s32 %v110, %v112
  %v114 = vrot.slane %v103, %v113
  %v116 = vunpack.c.l.s4 839922192
  %v117 = vunpack.c.0.s8 %v116
  %v118 = vlaneseq
  %v119 = vshrl.u32 %v118, 7
  %v120 = vsub.s32 %v117, %v119
  %v121 = vrot.slane %v107, %v120
  %v124 = vadd.f32 %v96, %v114
  %v125 = vadd.f32 %v97, %v121
  %126 = vst [vmem:[%s3] sm:$0xff] %v124
  %127 = vst [vmem:[%s3 + $0x8] sm:$0xff] %v125
  // Predicated region
  $region14: #{conditional_batch_norm_2d.1} parent=0 // pred_check
    _
  $region15: #{conditional_batch_norm_2d.1} parent=0 // pred_check_branch
    %129 = sbr.rel (0) target = $region17
  $region16: #{conditional_batch_norm_2d.1} parent=0 // pred_region
    _
  $region17: #{conditional_batch_norm_2d.1} parent=0 // pred_fallthru
    _
  // Predicated region
  $region18: #{conditional_batch_norm_2d.1} parent=0 // pred_check
    _
  $region19: #{conditional_batch_norm_2d.1} parent=0 // pred_check_branch
    %131 = sbr.rel (0) target = $region21
  $region20: #{conditional_batch_norm_2d.1} parent=0 // pred_region
    _
  $region21: #{conditional_batch_norm_2d.1} parent=0 // pred_fallthru
    _

</llo_original>
